<compile_context>
chip_gen: v7x
topology: tpu7x:2x2x1
jax: 0.10.0
libtpu: 0.0.40
codegen_flags: <defaults>
</compile_context>

<pallas_src>
import math
import jax
import jax.numpy as jnp
from jax.experimental import pallas as pl
from jax.experimental.pallas import tpu as pltpu

# ---------------- problem sizes (small, consistent with the module) ----------
BATCH = 2
INPUT_SIZE = 4
HIDDEN_SIZE = 32
OUTPUT_SIZE = 8
N_TERMS = 2          # self.n default
SEQ_LEN = 8          # timesteps driven by the sequence-fused kernel

_F32 = jnp.float32


# ---------------------------------------------------------------------------
# parameter packing (done ONCE, outside the per-call path)
# ---------------------------------------------------------------------------
def pack_params(params):
    H, I, n, O = HIDDEN_SIZE, INPUT_SIZE, N_TERMS, OUTPUT_SIZE
    # (n, H+I, H) -> (H+I, n*H) so columns [k*H:(k+1)*H] == hx_h_w[k]
    w2d = jnp.transpose(params["hx_h_w"], (1, 0, 2)).reshape(H + I, n * H)
    wh = w2d[:H]                                   # (H, n*H)   rows hitting h_0
    wx = w2d[H:]                                   # (I, n*H)   rows hitting x
    # column-pack both x-dependent weights -> ONE matmul for x per step/seq
    wxa = jnp.concatenate([wx, params["x_o_w"]], axis=1)        # (I, n*H + O)
    # p tiled over the n term-blocks + hx_h_b zero-padded share one slab
    p_tiled = jnp.tile(params["p_h"], (1, n))                   # (1, n*H)
    hb_pad = jnp.pad(params["hx_h_b"], ((0, 0), (0, (n - 1) * H)))
    pb = jnp.concatenate([p_tiled, hb_pad], axis=0)             # (2, n*H)
    # n-term fold as one tiny MXU dot: R = n stacked identities (n*H, H)
    R = jnp.tile(jnp.eye(H, dtype=_F32), (n, 1))                # (n*H, H)
    # output weight + folded bias share one slab
    wob = jnp.concatenate([params["h_o_w"],
                           params["h_o_b"] + params["x_o_b"]], axis=0)  # (H+1, O)
    return {"wh": wh, "wxa": wxa, "pb": pb, "R": R, "wob": wob}


# ---------------------------------------------------------------------------
# shared in-kernel math
# ---------------------------------------------------------------------------
def _h1_from_hk(hk, p, hb, r):
    """hk: (B, n*H) pre-activation. Returns h_1 (1, H)."""
    mag = jnp.power(jnp.abs(hk), p)                # EUP: exp(p*log|x|)
    # copysign-style select instead of sign(x)*mag (one VPU select).
    # NOTE: differs from sign(x)*|x|**p only at x==0 with p<=0; p inits to 1.0.
    frac = jnp.where(hk < 0.0, -mag, mag)          # (B, n*H)
    s = jnp.sum(frac, axis=0, keepdims=True)       # batch sublane-reduce (XLU)
    # fold the n lane-blocks with one tiny MXU dot (no lane slices / rolls)
    return jnp.dot(s, r, preferred_element_type=jnp.float32) + hb   # (1, H)


def _finish_step(hk, zx, pb_ref, r_ref, wob_ref, out_ref):
    """Shared tail of the single-step kernels; packs z and h_1 into out_ref."""
    H, O = HIDDEN_SIZE, OUTPUT_SIZE
    b = hk.shape[0]
    p = pb_ref[0:1, :]
    hb = pb_ref[1:2, :H]
    h1 = _h1_from_hk(hk, p, hb, r_ref[...])                           # (1, H)
    wo_h = wob_ref[:H, :]
    bo = wob_ref[H:H + 1, :]
    zh = jnp.dot(h1, wo_h, preferred_element_type=jnp.float32)        # (1, O)
    z = jax.nn.sigmoid(zx + zh + bo)                                  # (B, O)
    # single packed output slab: rows [0:B] lanes [0:O] = z, row B = h_1
    out_ref[0:b, 0:O] = z.astype(out_ref.dtype)
    out_ref[b:b + 1, 0:H] = h1.astype(out_ref.dtype)


# ---------------------------------------------------------------------------
# single-step kernels (faithful to DORNNCell_N.forward)
# ---------------------------------------------------------------------------
def dornn_step_kernel_noh(x_ref, wxa_ref, pb_ref, r_ref, wob_ref, out_ref):
    """hidden_state is None: h0==0 contributes nothing -> only x rows used."""
    nH = N_TERMS * HIDDEN_SIZE
    x = x_ref[...]                                                     # (B, I)
    xw = jnp.dot(x, wxa_ref[...], preferred_element_type=jnp.float32)  # (B, nH+O)
    _finish_step(xw[:, :nH], xw[:, nH:], pb_ref, r_ref, wob_ref, out_ref)


def dornn_step_kernel_h(h0_ref, x_ref, wh_ref, wxa_ref, pb_ref, r_ref,
                        wob_ref, out_ref):
    """hidden_state provided: split matmuls instead of a lane concat."""
    nH = N_TERMS * HIDDEN_SIZE
    x = x_ref[...]                                                     # (B, I)
    xw = jnp.dot(x, wxa_ref[...], preferred_element_type=jnp.float32)  # (B, nH+O)
    hk = xw[:, :nH] + jnp.dot(h0_ref[...], wh_ref[...],
                              preferred_element_type=jnp.float32)       # (B, nH)
    _finish_step(hk, xw[:, nH:], pb_ref, r_ref, wob_ref, out_ref)


# ---------------------------------------------------------------------------
# sequence-fused kernel: all T timesteps inside ONE invocation, grid=()
# ---------------------------------------------------------------------------
def dornn_seq_kernel(x_ref, wh_ref, wxa_ref, pb_ref, r_ref, wob_ref,
                     z_ref, hlast_ref, h1rep_ref):
    H, O, B, T = HIDDEN_SIZE, OUTPUT_SIZE, BATCH, SEQ_LEN
    nH = N_TERMS * H

    # hoist every x-dependent matmul out of the recurrent loop: one MXU pass
    x_all = x_ref[...]                                                  # (T*B, I)
    xw = jnp.dot(x_all, wxa_ref[...], preferred_element_type=jnp.float32)
    xk_all = xw[:, :nH]                                                 # (T*B, nH)
    zx_all = xw[:, nH:]                                                 # (T*B, O)

    wh = wh_ref[...]
    p = pb_ref[0:1, :]
    hb = pb_ref[1:2, :H]
    r = r_ref[...]

    def step(t, h_row):
        # serial critical path only: (1,H)@(H,nH) -> add -> pow -> reduce -> fold
        hk_h = jnp.dot(h_row, wh, preferred_element_type=jnp.float32)   # (1, nH)
        xk_t = jax.lax.dynamic_slice_in_dim(xk_all, t * B, B, axis=0)   # (B, nH)
        hk = xk_t + hk_h                                                # bcast add
        h1 = _h1_from_hk(hk, p, hb, r)                                  # (1, H)
        # stash h1 broadcast over the batch rows for the batched z matmul
        h1rep_ref[pl.ds(t * B, B), :] = jnp.broadcast_to(h1, (B, H))
        return h1

    h_last = jax.lax.fori_loop(0, T, step, jnp.zeros((1, H), jnp.float32),
                               unroll=True)

    # outputs for ALL timesteps in one matmul + one sigmoid + one block store
    wo_h = wob_ref[:H, :]
    bo = wob_ref[H:H + 1, :]
    z = jax.nn.sigmoid(
        jnp.dot(h1rep_ref[...], wo_h, preferred_element_type=jnp.float32)
        + zx_all + bo)                                                   # (T*B, O)
    z_ref[...] = z.astype(z_ref.dtype)
    hlast_ref[...] = h_last.astype(hlast_ref.dtype)


# ---------------------------------------------------------------------------
# cost estimates (advisory hints for the XLA scheduler)
# ---------------------------------------------------------------------------
def _step_cost(B, with_h0):
    H, I, O = HIDDEN_SIZE, INPUT_SIZE, OUTPUT_SIZE
    nH = N_TERMS * H
    flops = 2 * B * I * (nH + O) + 2 * nH * H + 2 * H * O
    if with_h0:
        flops += 2 * B * H * nH
    transcendentals = 2 * B * nH + B * O            # pow = log+exp, sigmoid ~ 1
    bytes_accessed = 4 * (B * I + (B * H if with_h0 else 0)
                          + H * nH + I * (nH + O) + 2 * nH + nH * H
                          + (H + 1) * O + (B + 1) * max(H, O))
    return pl.CostEstimate(flops=flops, transcendentals=transcendentals,
                           bytes_accessed=bytes_accessed)


def _seq_cost(T, B):
    H, I, O = HIDDEN_SIZE, INPUT_SIZE, OUTPUT_SIZE
    nH = N_TERMS * H
    flops = (2 * T * B * I * (nH + O)            # hoisted x matmul
             + T * (2 * H * nH + 2 * nH * H)     # per-step h matmul + fold
             + 2 * T * B * H * O)                # batched output matmul
    transcendentals = 2 * T * B * nH + T * B * O
    bytes_accessed = 4 * (T * B * (I + O) + H
                          + H * nH + I * (nH + O) + 2 * nH + nH * H + (H + 1) * O)
    return pl.CostEstimate(flops=flops, transcendentals=transcendentals,
                           bytes_accessed=bytes_accessed)


# ---------------------------------------------------------------------------
# wrappers
# ---------------------------------------------------------------------------
def dornn_cell_n_forward(x, packed, hidden_state=None):
    """Single-step forward. x: (B, I). Returns (z (B,O), (h_1 (1,H),))."""
    B = x.shape[0]
    H, O = HIDDEN_SIZE, OUTPUT_SIZE
    W = max(H, O)
    vmem = pl.BlockSpec(memory_space=pltpu.MemorySpace.VMEM)
    out_shape = jax.ShapeDtypeStruct((B + 1, W), x.dtype)   # packed z + h_1 slab
    if hidden_state is None:
        out = pl.pallas_call(
            dornn_step_kernel_noh,
            out_shape=out_shape,
            in_specs=[vmem] * 5,
            out_specs=vmem,
            cost_estimate=_step_cost(B, with_h0=False),
        )(x, packed["wxa"], packed["pb"], packed["R"], packed["wob"])
    else:
        out = pl.pallas_call(
            dornn_step_kernel_h,
            out_shape=out_shape,
            in_specs=[vmem] * 7,
            out_specs=vmem,
            cost_estimate=_step_cost(B, with_h0=True),
        )(hidden_state[0], x, packed["wh"], packed["wxa"], packed["pb"],
          packed["R"], packed["wob"])
    z = out[:B, :O]
    h1 = out[B:B + 1, :H]
    return z, (h1,)


def dornn_cell_n_sequence(x_seq, packed):
    """Drive T timesteps inside ONE pallas_call (grid=(), fori_loop inside).

    Between steps the (1, H) hidden state is broadcast across the batch, i.e.
    equivalent to calling the PyTorch cell per step with
    hidden_state = (h_1.expand(B, -1),)  (exact for B == 1).
    Returns (z_seq (T,B,O), h_last (1,H)).
    """
    T, B, I = x_seq.shape
    assert (T, B, I) == (SEQ_LEN, BATCH, INPUT_SIZE)
    H, O = HIDDEN_SIZE, OUTPUT_SIZE
    x_flat = x_seq.reshape(T * B, I)          # metadata-only reshape in wrapper
    vmem = pl.BlockSpec(memory_space=pltpu.MemorySpace.VMEM)
    z_flat, h_last = pl.pallas_call(
        dornn_seq_kernel,
        out_shape=(jax.ShapeDtypeStruct((T * B, O), x_seq.dtype),
                   jax.ShapeDtypeStruct((1, H), x_seq.dtype)),
        in_specs=[vmem] * 6,
        out_specs=(vmem, vmem),
        scratch_shapes=[pltpu.VMEM((T * B, H), jnp.float32)],   # h1 per step
        cost_estimate=_seq_cost(T, B),
    )(x_flat, packed["wh"], packed["wxa"], packed["pb"], packed["R"],
      packed["wob"])
    return z_flat.reshape(T, B, O), h_last


# ---------------------------------------------------------------------------
# init + plain-JAX references (mirror the PyTorch module)
# ---------------------------------------------------------------------------
def init_params(key):
    stdv = 1.0 / math.sqrt(HIDDEN_SIZE)
    k1, k2, k3 = jax.random.split(key, 3)
    return {
        "hx_h_w": jax.random.uniform(
            k1, (N_TERMS, HIDDEN_SIZE + INPUT_SIZE, HIDDEN_SIZE),
            minval=-stdv, maxval=stdv, dtype=_F32),
        "hx_h_b": jnp.zeros((1, HIDDEN_SIZE), _F32),
        "p_h": jnp.ones((1, HIDDEN_SIZE), _F32),
        "h_o_w": jax.random.uniform(k2, (HIDDEN_SIZE, OUTPUT_SIZE),
                                    minval=-stdv, maxval=stdv, dtype=_F32),
        "x_o_w": jax.random.uniform(k3, (INPUT_SIZE, OUTPUT_SIZE),
                                    minval=-stdv, maxval=stdv, dtype=_F32),
        "h_o_b": jnp.zeros((1, OUTPUT_SIZE), _F32),
        "x_o_b": jnp.zeros((1, OUTPUT_SIZE), _F32),
    }


def reference_forward(x, params, hidden_state=None):
    B = x.shape[0]
    h0 = jnp.zeros((B, HIDDEN_SIZE), x.dtype) if hidden_state is None else hidden_state[0]
    hx = jnp.concatenate([h0, x], axis=1)
    h1_terms = [hx @ params["hx_h_w"][k] for k in range(N_TERMS)]
    h1_cat = jnp.concatenate(h1_terms, axis=0)                       # (n*B, H)
    h1_cat = jnp.sign(h1_cat) * jnp.power(jnp.abs(h1_cat), params["p_h"])
    h1 = jnp.sum(h1_cat, axis=0, keepdims=True) + params["hx_h_b"]   # (1, H)
    z = (h1 @ params["h_o_w"] + x @ params["x_o_w"]
         + params["h_o_b"] + params["x_o_b"])
    return jax.nn.sigmoid(z), (h1,)


def reference_sequence(x_seq, params):
    T, B, _ = x_seq.shape
    h = jnp.zeros((B, HIDDEN_SIZE), x_seq.dtype)
    zs = []
    h1 = jnp.zeros((1, HIDDEN_SIZE), x_seq.dtype)
    for t in range(T):
        z, (h1,) = reference_forward(x_seq[t], params, hidden_state=(h,))
        zs.append(z)
        h = jnp.broadcast_to(h1, (B, HIDDEN_SIZE))
    return jnp.stack(zs), h1


# ---------------------------------------------------------------------------
if __name__ == "__main__":
    key = jax.random.PRNGKey(0)
    pkey, xkey, hkey, skey = jax.random.split(key, 4)
    params = init_params(pkey)
    packed = pack_params(params)

    # 1) single step, hidden_state=None
    x = jax.random.normal(xkey, (BATCH, INPUT_SIZE), dtype=_F32)
    z, (h1,) = dornn_cell_n_forward(x, packed)
    jax.block_until_ready(z)
    jax.block_until_ready(h1)
    z_ref, (h1_ref,) = reference_forward(x, params)
    assert z.shape == (BATCH, OUTPUT_SIZE) and h1.shape == (1, HIDDEN_SIZE)
    assert jnp.allclose(z, z_ref, atol=1e-5, rtol=1e-5)
    assert jnp.allclose(h1, h1_ref, atol=1e-5, rtol=1e-5)

    # 2) single step, hidden_state provided
    h0 = jax.random.normal(hkey, (BATCH, HIDDEN_SIZE), dtype=_F32)
    z2, (h1_2,) = dornn_cell_n_forward(x, packed, hidden_state=(h0,))
    jax.block_until_ready(z2)
    z2_ref, (h1_2_ref,) = reference_forward(x, params, hidden_state=(h0,))
    assert jnp.allclose(z2, z2_ref, atol=1e-5, rtol=1e-5)
    assert jnp.allclose(h1_2, h1_2_ref, atol=1e-5, rtol=1e-5)

    # 3) sequence-fused kernel (T steps, one launch, no per-step grid overhead)
    x_seq = jax.random.normal(skey, (SEQ_LEN, BATCH, INPUT_SIZE), dtype=_F32)
    z_seq, h_last = dornn_cell_n_sequence(x_seq, packed)
    jax.block_until_ready(z_seq)
    jax.block_until_ready(h_last)
    z_seq_ref, h_last_ref = reference_sequence(x_seq, params)
    assert z_seq.shape == (SEQ_LEN, BATCH, OUTPUT_SIZE) and h_last.shape == (1, HIDDEN_SIZE)
    assert jnp.allclose(z_seq, z_seq_ref, atol=1e-3, rtol=1e-3)
    assert jnp.allclose(h_last, h_last_ref, atol=1e-3, rtol=1e-3)

    print("KERNEL_OK")
</pallas_src>

<mosaic_0001>
module attributes {stable_mosaic.version = 11 : i64} {
  func.func @dornn_step_kernel_noh(%arg0: memref<2x4xf32, #tpu.memory_space<vmem>>, %arg1: memref<4x72xf32, #tpu.memory_space<vmem>>, %arg2: memref<2x64xf32, #tpu.memory_space<vmem>>, %arg3: memref<64x32xf32, #tpu.memory_space<vmem>>, %arg4: memref<33x8xf32, #tpu.memory_space<vmem>>, %arg5: memref<3x32xf32, #tpu.memory_space<vmem>>) attributes {dimension_semantics = [], scalar_prefetch = 0 : i64, scratch_operands = 0 : i64, tpu.core_type = #tpu.core_type<tc>} {
    %c0 = arith.constant 0 : index
    %c0_0 = arith.constant 0 : index
    %0 = vector.load %arg0[%c0, %c0_0] : memref<2x4xf32, #tpu.memory_space<vmem>>, vector<2x4xf32>
    %c0_1 = arith.constant 0 : index
    %c0_2 = arith.constant 0 : index
    %1 = vector.load %arg1[%c0_1, %c0_2] : memref<4x72xf32, #tpu.memory_space<vmem>>, vector<4x72xf32>
    %cst = arith.constant dense<0.000000e+00> : vector<2x72xf32>
    %2 = tpu.matmul %0, %1, %cst {dimension_numbers = #tpu.dot_dimension_numbers<[1], [0], [0], [1], [0, 0, 1, 1], [], []>} : vector<2x4xf32>, vector<4x72xf32>, vector<2x72xf32> -> vector<2x72xf32>
    %3 = vector.extract_strided_slice %2 {offsets = [0, 0], sizes = [2, 64], strides = [1, 1]} : vector<2x72xf32> to vector<2x64xf32>
    %4 = vector.extract_strided_slice %2 {offsets = [0, 64], sizes = [2, 8], strides = [1, 1]} : vector<2x72xf32> to vector<2x8xf32>
    %c0_3 = arith.constant 0 : index
    %c0_4 = arith.constant 0 : index
    %5 = vector.load %arg2[%c0_3, %c0_4] : memref<2x64xf32, #tpu.memory_space<vmem>>, vector<1x64xf32>
    %c1 = arith.constant 1 : index
    %c0_5 = arith.constant 0 : index
    %6 = vector.load %arg2[%c1, %c0_5] : memref<2x64xf32, #tpu.memory_space<vmem>>, vector<1x32xf32>
    %c0_6 = arith.constant 0 : index
    %c0_7 = arith.constant 0 : index
    %7 = vector.load %arg3[%c0_6, %c0_7] : memref<64x32xf32, #tpu.memory_space<vmem>>, vector<64x32xf32>
    %8 = math.absf %3 : vector<2x64xf32>
    %9 = vector.broadcast %5 : vector<1x64xf32> to vector<2x64xf32>
    %10 = math.powf %8, %9 : vector<2x64xf32>
    %cst_8 = arith.constant 0.000000e+00 : f32
    %11 = vector.broadcast %cst_8 : f32 to vector<2x64xf32>
    %12 = arith.cmpf olt, %3, %11 : vector<2x64xf32>
    %cst_9 = arith.constant 0.000000e+00 : f32
    %13 = vector.broadcast %cst_9 : f32 to vector<2x64xf32>
    %14 = arith.subf %13, %10 : vector<2x64xf32>
    %15 = arith.select %12, %14, %10 : vector<2x64xi1>, vector<2x64xf32>
    %cst_10 = arith.constant dense<0.000000e+00> : vector<64xf32>
    %16 = vector.multi_reduction <add>, %15, %cst_10 [0] : vector<2x64xf32> to vector<64xf32>
    %17 = vector.shape_cast %16 : vector<64xf32> to vector<1x64xf32>
    %cst_11 = arith.constant dense<0.000000e+00> : vector<1x32xf32>
    %18 = tpu.matmul %17, %7, %cst_11 {dimension_numbers = #tpu.dot_dimension_numbers<[1], [0], [0], [1], [0, 0, 1, 1], [], []>} : vector<1x64xf32>, vector<64x32xf32>, vector<1x32xf32> -> vector<1x32xf32>
    %19 = arith.addf %18, %6 : vector<1x32xf32>
    %c0_12 = arith.constant 0 : index
    %c0_13 = arith.constant 0 : index
    %20 = vector.load %arg4[%c0_12, %c0_13] : memref<33x8xf32, #tpu.memory_space<vmem>>, vector<32x8xf32>
    %c32 = arith.constant 32 : index
    %c0_14 = arith.constant 0 : index
    %21 = vector.load %arg4[%c32, %c0_14] : memref<33x8xf32, #tpu.memory_space<vmem>>, vector<1x8xf32>
    %cst_15 = arith.constant dense<0.000000e+00> : vector<1x8xf32>
    %22 = tpu.matmul %19, %20, %cst_15 {dimension_numbers = #tpu.dot_dimension_numbers<[1], [0], [0], [1], [0, 0, 1, 1], [], []>} : vector<1x32xf32>, vector<32x8xf32>, vector<1x8xf32> -> vector<1x8xf32>
    %23 = vector.broadcast %22 : vector<1x8xf32> to vector<2x8xf32>
    %24 = arith.addf %4, %23 : vector<2x8xf32>
    %25 = vector.broadcast %21 : vector<1x8xf32> to vector<2x8xf32>
    %26 = arith.addf %24, %25 : vector<2x8xf32>
    %27 = arith.negf %26 : vector<2x8xf32>
    %28 = math.exp %27 : vector<2x8xf32>
    %cst_16 = arith.constant 1.000000e+00 : f32
    %29 = vector.broadcast %cst_16 : f32 to vector<2x8xf32>
    %30 = arith.addf %29, %28 : vector<2x8xf32>
    %31 = arith.divf %29, %30 : vector<2x8xf32>
    %c0_17 = arith.constant 0 : index
    %c0_18 = arith.constant 0 : index
    %32 = vector.load %arg5[%c0_17, %c0_18] : memref<3x32xf32, #tpu.memory_space<vmem>>, vector<2x8xf32>
    tpu.vector_store %arg5[%c0_17, %c0_18], %31 {strides = array<i32>} : memref<3x32xf32, #tpu.memory_space<vmem>>, vector<2x8xf32>,
    %c2 = arith.constant 2 : index
    %c0_19 = arith.constant 0 : index
    %33 = vector.load %arg5[%c2, %c0_19] : memref<3x32xf32, #tpu.memory_space<vmem>>, vector<1x32xf32>
    tpu.vector_store %arg5[%c2, %c0_19], %19 {strides = array<i32>} : memref<3x32xf32, #tpu.memory_space<vmem>>, vector<1x32xf32>,
    return
  }
}

</mosaic_0001>

<llo_original>
// kernel: tpu_custom_call.1
$region0: #{tpu_custom_call.1}
  #allocation0 [shape = 'u32[]', space=smem, size = 0x4, offset = 0x4, fixed_abs, tag = 'smem constant byte address 0x4 - core index']
  #allocation1 [shape = 'u32[144,128]{1,0:T(1,128)}', space=vmem, size = 0x12000, scoped, tag = 'internal scratch']
  %s0 = inlined_call_operand.vmem [shape: f32[2,4], index: 0, kind: input, shape index: {}]
  %s1 = inlined_call_operand.vmem [shape: f32[4,72], index: 1, kind: input, shape index: {}]
  %s2 = inlined_call_operand.vmem [shape: f32[2,64], index: 2, kind: input, shape index: {}]
  %s3 = inlined_call_operand.vmem [shape: f32[64,32], index: 3, kind: input, shape index: {}]
  %s4 = inlined_call_operand.vmem [shape: f32[33,8], index: 4, kind: input, shape index: {}]
  %s5 = inlined_call_operand.hbm [shape: f32[3,32], index: 5, kind: output, shape index: {}]
  %s6 = sld [smem:[#allocation0]]
  $region30: #{tpu_custom_call.1} parent=0
    _
  %s8 = ssub.s32 1, %s6
  %s9 = scalar_select 0, %s8, %s6
  $region1: #{tpu_custom_call.1} parent=0
    #allocation2 [shape = 'u8[2048]{0}', space=vmem, size = 0x800, scoped, tag = 'output window, operand 0, single buffered']
    #allocation3 [shape = 's32[1]{0}', space=sflag, size = 0x4, scoped, tag = 'scoped memory for tpu_custom_call.1']
    %10 = vsyncpa [#allocation3], 0
    // Predicated region
    $region2: #{tpu_custom_call.1} parent=1 // pred_check
      _
    $region3: #{tpu_custom_call.1} parent=1 // pred_check_branch
      %12 = sbr.rel (0) target = $region5
    $region4: #{tpu_custom_call.1} parent=1 // pred_region
      _
    $region5: #{tpu_custom_call.1} parent=1 // pred_fallthru
      _
    // Predicated region
    $region6: #{tpu_custom_call.1} parent=1 // pred_check
      _
    $region7: #{tpu_custom_call.1} parent=1 // pred_check_branch
      %14 = sbr.rel (0) target = $region9
    $region8: #{tpu_custom_call.1} parent=1 // pred_region
      _
    $region9: #{tpu_custom_call.1} parent=1 // pred_fallthru
      _
    // Predicated region
    $region10: #{tpu_custom_call.1} parent=1 // pred_check
      _
    $region11: #{tpu_custom_call.1} parent=1 // pred_check_branch
      %16 = sbr.rel (0) target = $region13
    $region12: #{tpu_custom_call.1} parent=1 // pred_region
      _
    $region13: #{tpu_custom_call.1} parent=1 // pred_fallthru
      _
    // Predicated region
    $region14: #{tpu_custom_call.1} parent=1 // pred_check
      _
    $region15: #{tpu_custom_call.1} parent=1 // pred_check_branch
      %18 = sbr.rel (0) target = $region17
    $region16: #{tpu_custom_call.1} parent=1 // pred_region
      _
    $region17: #{tpu_custom_call.1} parent=1 // pred_fallthru
      _
    // Predicated region
    $region18: #{tpu_custom_call.1} parent=1 // pred_check
      _
    $region19: #{tpu_custom_call.1} parent=1 // pred_check_branch
      %20 = sbr.rel (0) target = $region21
    $region20: #{tpu_custom_call.1} parent=1 // pred_region
      _
    $region21: #{tpu_custom_call.1} parent=1 // pred_fallthru
      _
    %v21 = vld [vmem:[%s0] sm:$0x3]
    %v22 = vld [vmem:[%s1] sm:$0xf]
    %vm23 = vcmask 31744
    %v25 = vsel %vm23, %v21, 0
    %vm27 = vcmask 1043456
    %v29 = vsel %vm27, %v22, 0
    %31 = vmatprep.subr.mxu0 0.0
    %32 = vmatpush1.msra.mxu0 %v29
    %33 = vmatprep.subr.mxu0 0.0
    %34 = vmatpush1.msra.mxu0 0.0
    %35 = vmatprep.subr.mxu0 0.0
    %36 = vmatpush1.msra.mxu0 0.0
    %37 = vmatprep.subr.mxu0 0.0
    %38 = vmatpush1.msra.mxu0 0.0
    %39 = vmatprep.subr.mxu0 0.0
    %40 = vmatpush1.msra.mxu0 0.0
    %41 = vmatprep.subr.mxu0 0.0
    %42 = vmatpush1.msra.mxu0 0.0
    %43 = vmatprep.subr.mxu0 0.0
    %44 = vmatpush1.msra.mxu0 0.0
    %45 = vmatprep.subr.mxu0 0.0
    %46 = vmatpush1.msra.mxu0 0.0
    %47 = vmatprep.subr.mxu0 0.0
    %48 = vmatpush1.msra.mxu0 0.0
    %49 = vmatprep.subr.mxu0 0.0
    %50 = vmatpush1.msra.mxu0 0.0
    %51 = vmatprep.subr.mxu0 0.0
    %52 = vmatpush1.msra.mxu0 0.0
    %53 = vmatprep.subr.mxu0 0.0
    %54 = vmatpush1.msra.mxu0 0.0
    %55 = vmatprep.subr.mxu0 0.0
    %56 = vmatpush1.msra.mxu0 0.0
    %57 = vmatprep.subr.mxu0 0.0
    %58 = vmatpush1.msra.mxu0 0.0
    %59 = vmatprep.subr.mxu0 0.0
    %60 = vmatpush1.msra.mxu0 0.0
    %61 = vmatprep.subr.mxu0 0.0
    %62 = vmatpush1.msra.mxu0 0.0
    %63 = vmatprep.subr.mxu0 0.0
    %64 = vmatpush1.msra.mxu0 0.0
    %65 = vmatprep.subr.mxu0 0.0
    %66 = vmatpush1.msra.mxu0 0.0
    %67 = vmatprep.subr.mxu0 0.0
    %68 = vmatpush1.msra.mxu0 0.0
    %69 = vmatprep.subr.mxu0 0.0
    %70 = vmatpush1.msra.mxu0 0.0
    %71 = vmatprep.subr.mxu0 0.0
    %72 = vmatpush1.msra.mxu0 0.0
    %73 = vmatprep.subr.mxu0 0.0
    %74 = vmatpush1.msra.mxu0 0.0
    %75 = vmatprep.subr.mxu0 0.0
    %76 = vmatpush1.msra.mxu0 0.0
    %77 = vmatprep.subr.mxu0 0.0
    %78 = vmatpush1.msra.mxu0 0.0
    %79 = vmatprep.subr.mxu0 0.0
    %80 = vmatpush1.msra.mxu0 0.0
    %81 = vmatprep.subr.mxu0 0.0
    %82 = vmatpush1.msra.mxu0 0.0
    %83 = vmatprep.subr.mxu0 0.0
    %84 = vmatpush1.msra.mxu0 0.0
    %85 = vmatprep.subr.mxu0 0.0
    %86 = vmatpush1.msra.mxu0 0.0
    %87 = vmatprep.subr.mxu0 0.0
    %88 = vmatpush1.msra.mxu0 0.0
    %89 = vmatprep.subr.mxu0 0.0
    %90 = vmatpush1.msra.mxu0 0.0
    %91 = vmatprep.subr.mxu0 0.0
    %92 = vmatpush1.msra.mxu0 0.0
    %93 = vmatprep.subr.mxu0 0.0
    %94 = vmatpush1.msra.mxu0 0.0
    %95 = vmatprep.mubr.f32.mxu0 0.0
    %96 = vmatmul.mubr.f32.gmra.mrb[0].mxu0 %v25
    %v97 = vpop.f32.mrb[0].mxu0
    %v98 = vadd.f32 0.0, %v97
    %v99 = vpop.f32.mrb[0].mxu0
    %100 = vdwg.mxu0
    %v101 = vld [vmem:[%s2] sm:$0x1]
    %v102 = vld [vmem:[%s2 + $0x1] sm:$0x1]
    %v103 = vld [vmem:[%s3] sm:$0xff]
    %v104 = vld [vmem:[%s3 + $0x8] sm:$0xff]
    %v105 = vld [vmem:[%s3 + $0x10] sm:$0xff]
    %v106 = vld [vmem:[%s3 + $0x18] sm:$0xff]
    %v107 = vld [vmem:[%s3 + $0x20] sm:$0xff]
    %v108 = vld [vmem:[%s3 + $0x28] sm:$0xff]
    %v109 = vld [vmem:[%s3 + $0x30] sm:$0xff]
    %v110 = vld [vmem:[%s3 + $0x38] sm:$0xff]
    %v111 = vand.u32 2147483647, %v98
    %v112 = vlaneseq
    %v113 = vshrl.u32 %v112, 7
    %v114 = vsub.s32 0, %v113
    %v115 = vrot.slane %v101, %v114
    %v116 = vpow.f32 %v111, %v115
    %vm117 = vcmp.lt.f32.partialorder %v98, 0.0
    %v118 = vsub.f32 0.0, %v116
    %v119 = vsel %vm117, %v118, %v116
    %vm120 = vcmask 517120
    %v121 = vsel %vm120, %v119, 0.0
    %v122 = vrot.slane %v121, 4
    %v123 = vadd.f32 %v121, %v122
    %v124 = vrot.slane %v123, 2
    %v125 = vadd.f32 %v123, %v124
    %v126 = vrot.slane %v125, 1
    %v127 = vadd.f32 %v125, %v126
    %vm128 = vcmask 523264
    %v130 = vsel %vm128, %v127, 0
    %132 = vmatprep.subr.mxu0 0.0
    %133 = vmatpush1.msra.mxu0 %v103
    %134 = vmatprep.subr.mxu0 0.0
    %135 = vmatpush1.msra.mxu0 %v104
    %136 = vmatprep.subr.mxu0 0.0
    %137 = vmatpush1.msra.mxu0 %v105
    %138 = vmatprep.subr.mxu0 0.0
    %139 = vmatpush1.msra.mxu0 %v106
    %140 = vmatprep.subr.mxu0 0.0
    %141 = vmatpush1.msra.mxu0 %v107
    %142 = vmatprep.subr.mxu0 0.0
    %143 = vmatpush1.msra.mxu0 %v108
    %144 = vmatprep.subr.mxu0 0.0
    %145 = vmatpush1.msra.mxu0 %v109
    %146 = vmatprep.subr.mxu0 0.0
    %147 = vmatpush1.msra.mxu0 %v110
    %148 = vmatprep.subr.mxu0 0.0
    %149 = vmatpush1.msra.mxu0 0.0
    %150 = vmatprep.subr.mxu0 0.0
    %151 = vmatpush1.msra.mxu0 0.0
    %152 = vmatprep.subr.mxu0 0.0
    %153 = vmatpush1.msra.mxu0 0.0
    %154 = vmatprep.subr.mxu0 0.0
    %155 = vmatpush1.msra.mxu0 0.0
    %156 = vmatprep.subr.mxu0 0.0
    %157 = vmatpush1.msra.mxu0 0.0
    %158 = vmatprep.subr.mxu0 0.0
    %159 = vmatpush1.msra.mxu0 0.0
    %160 = vmatprep.subr.mxu0 0.0
    %161 = vmatpush1.msra.mxu0 0.0
    %162 = vmatprep.subr.mxu0 0.0
    %163 = vmatpush1.msra.mxu0 0.0
    %164 = vmatprep.subr.mxu0 0.0
    %165 = vmatpush1.msra.mxu0 0.0
    %166 = vmatprep.subr.mxu0 0.0
    %167 = vmatpush1.msra.mxu0 0.0
    %168 = vmatprep.subr.mxu0 0.0
    %169 = vmatpush1.msra.mxu0 0.0
    %170 = vmatprep.subr.mxu0 0.0
    %171 = vmatpush1.msra.mxu0 0.0
    %172 = vmatprep.subr.mxu0 0.0
    %173 = vmatpush1.msra.mxu0 0.0
    %174 = vmatprep.subr.mxu0 0.0
    %175 = vmatpush1.msra.mxu0 0.0
    %176 = vmatprep.subr.mxu0 0.0
    %177 = vmatpush1.msra.mxu0 0.0
    %178 = vmatprep.subr.mxu0 0.0
    %179 = vmatpush1.msra.mxu0 0.0
    %180 = vmatprep.subr.mxu0 0.0
    %181 = vmatpush1.msra.mxu0 0.0
    %182 = vmatprep.subr.mxu0 0.0
    %183 = vmatpush1.msra.mxu0 0.0
    %184 = vmatprep.subr.mxu0 0.0
    %185 = vmatpush1.msra.mxu0 0.0
    %186 = vmatprep.subr.mxu0 0.0
    %187 = vmatpush1.msra.mxu0 0.0
    %188 = vmatprep.subr.mxu0 0.0
    %189 = vmatpush1.msra.mxu0 0.0
    %190 = vmatprep.subr.mxu0 0.0
    %191 = vmatpush1.msra.mxu0 0.0
    %192 = vmatprep.subr.mxu0 0.0
    %193 = vmatpush1.msra.mxu0 0.0
    %194 = vmatprep.subr.mxu0 0.0
    %195 = vmatpush1.msra.mxu0 0.0
    %196 = vmatprep.mubr.f32.mxu0 0.0
    %197 = vmatmul.mubr.f32.gmra.mrb[0].mxu0 %v130
    %v198 = vpop.f32.mrb[0].mxu0
    %v199 = vadd.f32 %v102, %v198
    %v200 = vpop.f32.mrb[0].mxu0
    %201 = vdwg.mxu0
    %v202 = vld [vmem:[%s4] sm:$0xff]
    %v203 = vld [vmem:[%s4 + $0x8] sm:$0xff]
    %v204 = vld [vmem:[%s4 + $0x10] sm:$0xff]
    %v205 = vld [vmem:[%s4 + $0x18] sm:$0xff]
    %v206 = vld [vmem:[%s4 + $0x20] sm:$0x1]
    %vm207 = vcmask 261120
    %v209 = vsel %vm207, %v199, 0
    %211 = vmatprep.subr.mxu0 0.0
    %212 = vmatpush1.msra.mxu0 %v202
    %213 = vmatprep.subr.mxu0 0.0
    %214 = vmatpush1.msra.mxu0 %v203
    %215 = vmatprep.subr.mxu0 0.0
    %216 = vmatpush1.msra.mxu0 %v204
    %217 = vmatprep.subr.mxu0 0.0
    %218 = vmatpush1.msra.mxu0 %v205
    %219 = vmatprep.subr.mxu0 0.0
    %220 = vmatpush1.msra.mxu0 0.0
    %221 = vmatprep.subr.mxu0 0.0
    %222 = vmatpush1.msra.mxu0 0.0
    %223 = vmatprep.subr.mxu0 0.0
    %224 = vmatpush1.msra.mxu0 0.0
    %225 = vmatprep.subr.mxu0 0.0
    %226 = vmatpush1.msra.mxu0 0.0
    %227 = vmatprep.subr.mxu0 0.0
    %228 = vmatpush1.msra.mxu0 0.0
    %229 = vmatprep.subr.mxu0 0.0
    %230 = vmatpush1.msra.mxu0 0.0
    %231 = vmatprep.subr.mxu0 0.0
    %232 = vmatpush1.msra.mxu0 0.0
    %233 = vmatprep.subr.mxu0 0.0
    %234 = vmatpush1.msra.mxu0 0.0
    %235 = vmatprep.subr.mxu0 0.0
    %236 = vmatpush1.msra.mxu0 0.0
    %237 = vmatprep.subr.mxu0 0.0
    %238 = vmatpush1.msra.mxu0 0.0
    %239 = vmatprep.subr.mxu0 0.0
    %240 = vmatpush1.msra.mxu0 0.0
    %241 = vmatprep.subr.mxu0 0.0
    %242 = vmatpush1.msra.mxu0 0.0
    %243 = vmatprep.subr.mxu0 0.0
    %244 = vmatpush1.msra.mxu0 0.0
    %245 = vmatprep.subr.mxu0 0.0
    %246 = vmatpush1.msra.mxu0 0.0
    %247 = vmatprep.subr.mxu0 0.0
    %248 = vmatpush1.msra.mxu0 0.0
    %249 = vmatprep.subr.mxu0 0.0
    %250 = vmatpush1.msra.mxu0 0.0
    %251 = vmatprep.subr.mxu0 0.0
    %252 = vmatpush1.msra.mxu0 0.0
    %253 = vmatprep.subr.mxu0 0.0
    %254 = vmatpush1.msra.mxu0 0.0
    %255 = vmatprep.subr.mxu0 0.0
    %256 = vmatpush1.msra.mxu0 0.0
    %257 = vmatprep.subr.mxu0 0.0
    %258 = vmatpush1.msra.mxu0 0.0
    %259 = vmatprep.subr.mxu0 0.0
    %260 = vmatpush1.msra.mxu0 0.0
    %261 = vmatprep.subr.mxu0 0.0
    %262 = vmatpush1.msra.mxu0 0.0
    %263 = vmatprep.subr.mxu0 0.0
    %264 = vmatpush1.msra.mxu0 0.0
    %265 = vmatprep.subr.mxu0 0.0
    %266 = vmatpush1.msra.mxu0 0.0
    %267 = vmatprep.subr.mxu0 0.0
    %268 = vmatpush1.msra.mxu0 0.0
    %269 = vmatprep.subr.mxu0 0.0
    %270 = vmatpush1.msra.mxu0 0.0
    %271 = vmatprep.subr.mxu0 0.0
    %272 = vmatpush1.msra.mxu0 0.0
    %273 = vmatprep.subr.mxu0 0.0
    %274 = vmatpush1.msra.mxu0 0.0
    %275 = vmatprep.mubr.f32.mxu0 0.0
    %276 = vmatmul.mubr.f32.gmra.mrb[0].mxu0 %v209
    %v277 = vpop.f32.mrb[0].mxu0
    %v278 = vadd.f32 0.0, %v277
    %v279 = vpop.f32.mrb[0].mxu0
    %280 = vdwg.mxu0
    %v281 = vlaneseq
    %v282 = vshrl.u32 %v281, 7
    %v283 = vsub.s32 0, %v282
    %v284 = vrot.slane %v278, %v283
    %286 = vrot.lane.b32.xlu0 %v284, 64
    %v287 = vpop.permute.xlu0 %286
    %v289 = vadd.f32 %v98, %v287
    %v290 = vlaneseq
    %v291 = vshrl.u32 %v290, 7
    %v292 = vsub.s32 0, %v291
    %v293 = vrot.slane %v206, %v292
    %295 = vrot.lane.b32.xlu0 %v293, 64
    %v296 = vpop.permute.xlu0 %295
    %v298 = vadd.f32 %v289, %v296
    %v299 = vxor.u32 %v298, 2147483648
    %v300 = vmul.f32 %v299, 1.442695
    %v301 = vpow.pop %v300
    %v302 = vadd.f32 %v301, 1.0
    %v303 = vrcp.pop %v302
    %v304 = vmul.f32 1.0, %v303
    %306 = vrot.lane.b32.xlu0 %v304, 64
    %v307 = vpop.permute.xlu0 %306
    %vm309 = vcmask 58368
    %310 = vst.msk [vmem:[#allocation2] sm:$0x3] %vm309, %v307
    %vm311 = vcmask 253952
    %312 = vst.msk [vmem:[#allocation2 + $0x2] sm:$0x1] %vm311, %v199
    // Predicated region
    $region22: #{tpu_custom_call.1} parent=1 // pred_check
      _
    $region23: #{tpu_custom_call.1} parent=1 // pred_check_branch
      %314 = sbr.rel (0) target = $region25
    $region24: #{tpu_custom_call.1} parent=1 // pred_region
      %s316 = ssub.s32 64, 64
      %317 = vsyncadd [#allocation3], %s316
      %s319 = sshll.u32 [#allocation2], 4
      %s320 = int_to_ptr.vmem [resolvable:$true] %s319
      %322 = dma.vmem_to_hbm [thread:$0]  %s320, 64, %s5, [#allocation3]
    $region25: #{tpu_custom_call.1} parent=1 // pred_fallthru
      _
    // Predicated region
    $region26: #{tpu_custom_call.1} parent=1 // pred_check
      _
    $region27: #{tpu_custom_call.1} parent=1 // pred_check_branch
      %324 = sbr.rel (0) target = $region29
    $region28: #{tpu_custom_call.1} parent=1 // pred_region
      %325 = dma.done [#allocation3], 64
    $region29: #{tpu_custom_call.1} parent=1 // pred_fallthru
      _
    %326 = vsyncpa [#allocation3], 1

</llo_original>
